<compile_context>
chip_gen: v7x
topology: tpu7x:2x2x1
jax: 0.10.0
libtpu: 0.0.40
codegen_flags: <defaults>
</compile_context>

<pallas_src>
import functools

import jax
import jax.numpy as jnp
from jax import lax
from jax.experimental import pallas as pl
from jax.experimental.pallas import tpu as pltpu

LANE = 128  # TPU lane width; class dim is padded to this for lane-dense stores


def _gcn_kernel(a_ref, x_ref, w1_ref, b1_ref, w2_ref, b2_ref, o_ref, *, num_classes):
    # bf16 operands feed the MXU; all accumulation is f32.
    a = a_ref[...]                       # (N, N)    bf16 normalized adjacency
    x = x_ref[...]                       # (N, F)    bf16 node features

    # --- GCNConv 1: A_hat @ (X @ W1) + b1, then ReLU -----------------------
    xw1 = jnp.dot(x, w1_ref[...], preferred_element_type=jnp.float32)        # (N, H)
    h1 = jnp.dot(a, xw1.astype(jnp.bfloat16),
                 preferred_element_type=jnp.float32) + b1_ref[...]
    h1 = jnp.maximum(h1, 0.0)

    # dropout(p=0.5, training=False) == identity (eval-mode forward)
    # TODO(synk): training-mode dropout would need pltpu.prng_seed/prng_random_bits.

    # --- GCNConv 2: A_hat @ (H1 @ W2_pad) + b2_pad  (class dim padded to LANE) ---
    hw2 = jnp.dot(h1.astype(jnp.bfloat16), w2_ref[...],
                  preferred_element_type=jnp.float32)                        # (N, LANE)
    h2 = jnp.dot(a, hw2.astype(jnp.bfloat16),
                 preferred_element_type=jnp.float32) + b2_ref[...]           # (N, LANE)

    # --- softmax over the first num_classes lanes (padded lanes masked out) ------
    lane_ids = lax.broadcasted_iota(jnp.int32, h2.shape, 1)
    h2 = jnp.where(lane_ids < num_classes, h2, -jnp.inf)
    m = jnp.max(h2, axis=-1, keepdims=True)
    e = jnp.exp(h2 - m)                                   # padded lanes -> exp(-inf)=0
    denom = jnp.sum(e, axis=-1, keepdims=True)
    o_ref[...] = e * pl.reciprocal(denom, approx=True)    # EUP reciprocal, keeps VALU clear


@jax.jit
def gcn_forward(a_hat, x, w1, b1, w2, b2):
    n = x.shape[0]
    num_classes = w2.shape[1]

    # bf16 MXU operands (native on v6e/v7x); f32 accumulation inside the kernel.
    a_bf = a_hat.astype(jnp.bfloat16)
    x_bf = x.astype(jnp.bfloat16)
    w1_bf = w1.astype(jnp.bfloat16)

    # Pad the class dimension to a full lane width so the output store is unmasked.
    w2_p = jnp.zeros((w2.shape[0], LANE), jnp.bfloat16)
    w2_p = w2_p.at[:, :num_classes].set(w2.astype(jnp.bfloat16))
    b2_p = jnp.zeros((1, LANE), jnp.float32).at[:, :num_classes].set(b2)

    vmem = pl.BlockSpec(memory_space=pltpu.MemorySpace.VMEM)
    out_padded = pl.pallas_call(
        functools.partial(_gcn_kernel, num_classes=num_classes),
        out_shape=jax.ShapeDtypeStruct((n, LANE), jnp.float32),
        in_specs=[vmem] * 6,
        out_specs=vmem,
        compiler_params=pltpu.CompilerParams(vmem_limit_bytes=32 * 1024 * 1024),
    )(a_bf, x_bf, w1_bf, b1, w2_p, b2_p)
    # Slice the padded lanes away outside the kernel (plain XLA, cheap at this size).
    return out_padded[:, :num_classes]


def build_normalized_adjacency(edge_index, num_nodes):
    """Dense  D^{-1/2} (A + I) D^{-1/2}  matching PyG GCNConv defaults.

    Duplicate edges scatter-add; self loops are added only where missing
    (add_remaining_self_loops semantics).
    """
    src, dst = edge_index
    adj = jnp.zeros((num_nodes, num_nodes), jnp.float32)
    adj = adj.at[dst, src].add(1.0)               # message flows source -> target
    has_self = jnp.diag(adj) > 0
    adj = adj + jnp.diag(jnp.where(has_self, 0.0, 1.0))
    deg = jnp.sum(adj, axis=1)                    # in-degree incl. self loop
    d_inv_sqrt = jnp.where(deg > 0, 1.0 / jnp.sqrt(deg), 0.0)
    return d_inv_sqrt[:, None] * adj * d_inv_sqrt[None, :]


def gcn_reference(a_hat, x, w1, b1, w2, b2):
    """Pure-JAX f32 reference for correctness checking."""
    h1 = jnp.maximum(a_hat @ (x @ w1) + b1, 0.0)
    h2 = a_hat @ (h1 @ w2) + b2
    return jax.nn.softmax(h2, axis=-1)


def glorot(key, shape):
    fan_in, fan_out = shape
    limit = jnp.sqrt(6.0 / (fan_in + fan_out))
    return jax.random.uniform(key, shape, jnp.float32, -limit, limit)


if __name__ == "__main__":
    key = jax.random.PRNGKey(0)

    num_nodes = 16
    num_node_features = 4
    hidden_channels = [32]
    num_classes = 2

    k_x, k_w1, k_w2 = jax.random.split(key, 3)

    # Node features
    x = jax.random.normal(k_x, (num_nodes, num_node_features), jnp.float32)

    # Deterministic edge_index: a ring graph (both directions)
    src = jnp.arange(num_nodes, dtype=jnp.int32)
    dst = (src + 1) % num_nodes
    edge_index = jnp.stack(
        [jnp.concatenate([src, dst]), jnp.concatenate([dst, src])], axis=0
    )

    a_hat = build_normalized_adjacency(edge_index, num_nodes)

    # Parameters (GCNConv: glorot weights, zero bias) — deterministic init
    w1 = glorot(k_w1, (num_node_features, hidden_channels[0]))
    b1 = jnp.zeros((1, hidden_channels[0]), jnp.float32)
    w2 = glorot(k_w2, (hidden_channels[0], num_classes))
    b2 = jnp.zeros((1, num_classes), jnp.float32)

    out = gcn_forward(a_hat, x, w1, b1, w2, b2)
    out = jax.block_until_ready(out)

    ref = gcn_reference(a_hat, x, w1, b1, w2, b2)

    # sanity: shape, rows sum to ~1 (approx reciprocal), and matches f32 reference
    assert out.shape == (num_nodes, num_classes)
    assert bool(jnp.allclose(jnp.sum(out, axis=-1), 1.0, atol=5e-3))
    assert bool(jnp.allclose(out, ref, atol=3e-2))

    print("KERNEL_OK")
</pallas_src>

<mosaic_0001>
module attributes {stable_mosaic.version = 11 : i64} {
  func.func @_gcn_kernel(%arg0: memref<16x16xbf16, #tpu.memory_space<vmem>>, %arg1: memref<16x4xbf16, #tpu.memory_space<vmem>>, %arg2: memref<4x32xbf16, #tpu.memory_space<vmem>>, %arg3: memref<1x32xf32, #tpu.memory_space<vmem>>, %arg4: memref<32x128xbf16, #tpu.memory_space<vmem>>, %arg5: memref<1x128xf32, #tpu.memory_space<vmem>>, %arg6: memref<16x128xf32, #tpu.memory_space<vmem>>) attributes {dimension_semantics = [], scalar_prefetch = 0 : i64, scratch_operands = 0 : i64, tpu.core_type = #tpu.core_type<tc>} {
    %c0 = arith.constant 0 : index
    %c0_0 = arith.constant 0 : index
    %0 = vector.load %arg0[%c0, %c0_0] : memref<16x16xbf16, #tpu.memory_space<vmem>>, vector<16x16xbf16>
    %c0_1 = arith.constant 0 : index
    %c0_2 = arith.constant 0 : index
    %1 = vector.load %arg1[%c0_1, %c0_2] : memref<16x4xbf16, #tpu.memory_space<vmem>>, vector<16x4xbf16>
    %c0_3 = arith.constant 0 : index
    %c0_4 = arith.constant 0 : index
    %2 = vector.load %arg2[%c0_3, %c0_4] : memref<4x32xbf16, #tpu.memory_space<vmem>>, vector<4x32xbf16>
    %cst = arith.constant dense<0.000000e+00> : vector<16x32xf32>
    %3 = tpu.matmul %1, %2, %cst {dimension_numbers = #tpu.dot_dimension_numbers<[1], [0], [0], [1], [0, 0, 1, 1], [], []>} : vector<16x4xbf16>, vector<4x32xbf16>, vector<16x32xf32> -> vector<16x32xf32>
    %4 = arith.truncf %3 : vector<16x32xf32> to vector<16x32xbf16>
    %cst_5 = arith.constant dense<0.000000e+00> : vector<16x32xf32>
    %5 = tpu.matmul %0, %4, %cst_5 {dimension_numbers = #tpu.dot_dimension_numbers<[1], [0], [0], [1], [0, 0, 1, 1], [], []>} : vector<16x16xbf16>, vector<16x32xbf16>, vector<16x32xf32> -> vector<16x32xf32>
    %c0_6 = arith.constant 0 : index
    %c0_7 = arith.constant 0 : index
    %6 = vector.load %arg3[%c0_6, %c0_7] : memref<1x32xf32, #tpu.memory_space<vmem>>, vector<1x32xf32>
    %7 = vector.broadcast %6 : vector<1x32xf32> to vector<16x32xf32>
    %8 = arith.addf %5, %7 : vector<16x32xf32>
    %cst_8 = arith.constant 0.000000e+00 : f32
    %9 = vector.broadcast %cst_8 : f32 to vector<16x32xf32>
    %10 = arith.maximumf %8, %9 : vector<16x32xf32>
    %11 = arith.truncf %10 : vector<16x32xf32> to vector<16x32xbf16>
    %c0_9 = arith.constant 0 : index
    %c0_10 = arith.constant 0 : index
    %12 = vector.load %arg4[%c0_9, %c0_10] : memref<32x128xbf16, #tpu.memory_space<vmem>>, vector<32x128xbf16>
    %cst_11 = arith.constant dense<0.000000e+00> : vector<16x128xf32>
    %13 = tpu.matmul %11, %12, %cst_11 {dimension_numbers = #tpu.dot_dimension_numbers<[1], [0], [0], [1], [0, 0, 1, 1], [], []>} : vector<16x32xbf16>, vector<32x128xbf16>, vector<16x128xf32> -> vector<16x128xf32>
    %14 = arith.truncf %13 : vector<16x128xf32> to vector<16x128xbf16>
    %cst_12 = arith.constant dense<0.000000e+00> : vector<16x128xf32>
    %15 = tpu.matmul %0, %14, %cst_12 {dimension_numbers = #tpu.dot_dimension_numbers<[1], [0], [0], [1], [0, 0, 1, 1], [], []>} : vector<16x16xbf16>, vector<16x128xbf16>, vector<16x128xf32> -> vector<16x128xf32>
    %c0_13 = arith.constant 0 : index
    %c0_14 = arith.constant 0 : index
    %16 = vector.load %arg5[%c0_13, %c0_14] : memref<1x128xf32, #tpu.memory_space<vmem>>, vector<1x128xf32>
    %17 = vector.broadcast %16 : vector<1x128xf32> to vector<16x128xf32>
    %18 = arith.addf %15, %17 : vector<16x128xf32>
    %19 = tpu.iota {dimensions = array<i32: 1>} : vector<16x128xi32>
    %c2_i32 = arith.constant 2 : i32
    %20 = vector.broadcast %c2_i32 : i32 to vector<16x128xi32>
    %21 = arith.cmpi slt, %19, %20 : vector<16x128xi32>
    %cst_15 = arith.constant 0xFF800000 : f32
    %22 = vector.broadcast %cst_15 : f32 to vector<16x128xf32>
    %23 = arith.select %21, %18, %22 : vector<16x128xi1>, vector<16x128xf32>
    %cst_16 = arith.constant dense<0xFF800000> : vector<16xf32>
    %24 = vector.multi_reduction <maximumf>, %23, %cst_16 [1] : vector<16x128xf32> to vector<16xf32>
    %25 = vector.shape_cast %24 : vector<16xf32> to vector<16x1xf32>
    %26 = vector.broadcast %25 : vector<16x1xf32> to vector<16x128xf32>
    %27 = arith.subf %23, %26 : vector<16x128xf32>
    %28 = math.exp %27 : vector<16x128xf32>
    %cst_17 = arith.constant dense<0.000000e+00> : vector<16xf32>
    %29 = vector.multi_reduction <add>, %28, %cst_17 [1] : vector<16x128xf32> to vector<16xf32>
    %30 = vector.shape_cast %29 : vector<16xf32> to vector<16x1xf32>
    %31 = tpu.reciprocal %30 {approx = true} : vector<16x1xf32> -> vector<16x1xf32>
    %32 = vector.broadcast %31 : vector<16x1xf32> to vector<16x128xf32>
    %33 = arith.mulf %28, %32 : vector<16x128xf32>
    %c0_18 = arith.constant 0 : index
    %c0_19 = arith.constant 0 : index
    %34 = vector.load %arg6[%c0_18, %c0_19] : memref<16x128xf32, #tpu.memory_space<vmem>>, vector<16x128xf32>
    tpu.vector_store %arg6[%c0_18, %c0_19], %33 {strides = array<i32>} : memref<16x128xf32, #tpu.memory_space<vmem>>, vector<16x128xf32>,
    return
  }
}

</mosaic_0001>

<llo_original>
// kernel: gcn_forward.1
$region0: #{gcn_forward.1}
  #allocation0 [shape = 'u32[]', space=smem, size = 0x4, offset = 0x4, fixed_abs, tag = 'smem constant byte address 0x4 - core index']
  #allocation1 [shape = 'u32[144,128]{1,0:T(1,128)}', space=vmem, size = 0x12000, scoped, tag = 'internal scratch']
  %s0 = inlined_call_operand.vmem [shape: bf16[16,16], index: 0, kind: input, shape index: {}]
  %s1 = inlined_call_operand.vmem [shape: bf16[16,4], index: 1, kind: input, shape index: {}]
  %s2 = inlined_call_operand.vmem [shape: bf16[4,32], index: 2, kind: input, shape index: {}]
  %s3 = inlined_call_operand.vmem [shape: f32[1,32], index: 3, kind: input, shape index: {}]
  %s4 = inlined_call_operand.vmem [shape: bf16[32,128], index: 4, kind: input, shape index: {}]
  %s5 = inlined_call_operand.vmem [shape: f32[1,128], index: 5, kind: input, shape index: {}]
  %s6 = inlined_call_operand.vmem [shape: f32[16,128], index: 6, kind: output, shape index: {}]
  %s7 = sld [smem:[#allocation0]]
  $region34: #{gcn_forward.1} parent=0
    _
  %s9 = ssub.s32 1, %s7
  %s10 = scalar_select 0, %s9, %s7
  // Predicated region
  $region2: #{gcn_forward.1} parent=0 // pred_check
    _
  $region3: #{gcn_forward.1} parent=0 // pred_check_branch
    %12 = sbr.rel (0) target = $region5
  $region4: #{gcn_forward.1} parent=0 // pred_region
    _
  $region5: #{gcn_forward.1} parent=0 // pred_fallthru
    _
  // Predicated region
  $region6: #{gcn_forward.1} parent=0 // pred_check
    _
  $region7: #{gcn_forward.1} parent=0 // pred_check_branch
    %14 = sbr.rel (0) target = $region9
  $region8: #{gcn_forward.1} parent=0 // pred_region
    _
  $region9: #{gcn_forward.1} parent=0 // pred_fallthru
    _
  // Predicated region
  $region10: #{gcn_forward.1} parent=0 // pred_check
    _
  $region11: #{gcn_forward.1} parent=0 // pred_check_branch
    %16 = sbr.rel (0) target = $region13
  $region12: #{gcn_forward.1} parent=0 // pred_region
    _
  $region13: #{gcn_forward.1} parent=0 // pred_fallthru
    _
  // Predicated region
  $region14: #{gcn_forward.1} parent=0 // pred_check
    _
  $region15: #{gcn_forward.1} parent=0 // pred_check_branch
    %18 = sbr.rel (0) target = $region17
  $region16: #{gcn_forward.1} parent=0 // pred_region
    _
  $region17: #{gcn_forward.1} parent=0 // pred_fallthru
    _
  // Predicated region
  $region18: #{gcn_forward.1} parent=0 // pred_check
    _
  $region19: #{gcn_forward.1} parent=0 // pred_check_branch
    %20 = sbr.rel (0) target = $region21
  $region20: #{gcn_forward.1} parent=0 // pred_region
    _
  $region21: #{gcn_forward.1} parent=0 // pred_fallthru
    _
  // Predicated region
  $region22: #{gcn_forward.1} parent=0 // pred_check
    _
  $region23: #{gcn_forward.1} parent=0 // pred_check_branch
    %22 = sbr.rel (0) target = $region25
  $region24: #{gcn_forward.1} parent=0 // pred_region
    _
  $region25: #{gcn_forward.1} parent=0 // pred_fallthru
    _
  %v24 = vld [vmem:[%s0] sm:$0xf]
  %v25 = vld [vmem:[%s0 + $0x4] sm:$0xf]
  %v26 = vld [vmem:[%s1] sm:$0xf]
  %v27 = vld [vmem:[%s1 + $0x4] sm:$0xf]
  %v28 = vld [vmem:[%s2] sm:$0x3]
  %v31 = vunpack.c.l.b16 %v26
  %v32 = vunpack.c.l.b16 %v27
  %v33 = vpack.c.b16 %v32, %v31
  %vm34 = vcmask 31744
  %v36 = vsel %vm34, %v33, 0
  %vm38 = vcmask 1041408
  %v40 = vsel %vm38, %v28, 0
  %42 = vmatprep.subr.bf16.mxu0 0
  %43 = vmatpush1.bf16.msra.mxu0 %v40
  %44 = vmatprep.subr.bf16.mxu0 0
  %45 = vmatpush1.bf16.msra.mxu0 0
  %46 = vmatprep.subr.bf16.mxu0 0
  %47 = vmatpush1.bf16.msra.mxu0 0
  %48 = vmatprep.subr.bf16.mxu0 0
  %49 = vmatpush1.bf16.msra.mxu0 0
  %50 = vmatprep.subr.bf16.mxu0 0
  %51 = vmatpush1.bf16.msra.mxu0 0
  %52 = vmatprep.subr.bf16.mxu0 0
  %53 = vmatpush1.bf16.msra.mxu0 0
  %54 = vmatprep.subr.bf16.mxu0 0
  %55 = vmatpush1.bf16.msra.mxu0 0
  %56 = vmatprep.subr.bf16.mxu0 0
  %57 = vmatpush1.bf16.msra.mxu0 0
  %58 = vmatprep.subr.bf16.mxu0 0
  %59 = vmatpush1.bf16.msra.mxu0 0
  %60 = vmatprep.subr.bf16.mxu0 0
  %61 = vmatpush1.bf16.msra.mxu0 0
  %62 = vmatprep.subr.bf16.mxu0 0
  %63 = vmatpush1.bf16.msra.mxu0 0
  %64 = vmatprep.subr.bf16.mxu0 0
  %65 = vmatpush1.bf16.msra.mxu0 0
  %66 = vmatprep.subr.bf16.mxu0 0
  %67 = vmatpush1.bf16.msra.mxu0 0
  %68 = vmatprep.subr.bf16.mxu0 0
  %69 = vmatpush1.bf16.msra.mxu0 0
  %70 = vmatprep.subr.bf16.mxu0 0
  %71 = vmatpush1.bf16.msra.mxu0 0
  %72 = vmatprep.subr.bf16.mxu0 0
  %73 = vmatpush1.bf16.msra.mxu0 0
  %74 = vmatprep.mubr.bf16.mxu0 0
  %75 = vmatmul.mubr.bf16.gmra.mrb[0].mxu0 %v36
  %v76 = vpop.f32.mrb[0].mxu0
  %v77 = vadd.f32 0.0, %v76
  %v78 = vpop.f32.mrb[0].mxu0
  %v79 = vpop.f32.mrb[0].mxu0
  %v80 = vadd.f32 0.0, %v79
  %v81 = vpop.f32.mrb[0].mxu0
  %82 = vdwg.mxu0
  %v83 = vpack.c.bf16 %v80, %v77
  %v84 = vld [vmem:[%s3] sm:$0x1]
  %v86 = vlaneseq
  %v87 = vshrl.u32 %v86, 7
  %v88 = vsub.s32 0, %v87
  %v89 = vrot.slane %v84, %v88
  %v93 = vunpack.c.l.b16 %v24
  %v94 = vunpack.c.l.b16 %v25
  %v95 = vpack.c.b16 %v94, %v93
  %vm96 = vcmask 130048
  %v98 = vsel %vm96, %v95, 0
  %100 = vmatprep.subr.bf16.mxu0 0
  %101 = vmatpush1.bf16.msra.mxu0 %v83
  %102 = vmatprep.subr.bf16.mxu0 0
  %103 = vmatpush1.bf16.msra.mxu0 0
  %104 = vmatprep.subr.bf16.mxu0 0
  %105 = vmatpush1.bf16.msra.mxu0 0
  %106 = vmatprep.subr.bf16.mxu0 0
  %107 = vmatpush1.bf16.msra.mxu0 0
  %108 = vmatprep.subr.bf16.mxu0 0
  %109 = vmatpush1.bf16.msra.mxu0 0
  %110 = vmatprep.subr.bf16.mxu0 0
  %111 = vmatpush1.bf16.msra.mxu0 0
  %112 = vmatprep.subr.bf16.mxu0 0
  %113 = vmatpush1.bf16.msra.mxu0 0
  %114 = vmatprep.subr.bf16.mxu0 0
  %115 = vmatpush1.bf16.msra.mxu0 0
  %116 = vmatprep.subr.bf16.mxu0 0
  %117 = vmatpush1.bf16.msra.mxu0 0
  %118 = vmatprep.subr.bf16.mxu0 0
  %119 = vmatpush1.bf16.msra.mxu0 0
  %120 = vmatprep.subr.bf16.mxu0 0
  %121 = vmatpush1.bf16.msra.mxu0 0
  %122 = vmatprep.subr.bf16.mxu0 0
  %123 = vmatpush1.bf16.msra.mxu0 0
  %124 = vmatprep.subr.bf16.mxu0 0
  %125 = vmatpush1.bf16.msra.mxu0 0
  %126 = vmatprep.subr.bf16.mxu0 0
  %127 = vmatpush1.bf16.msra.mxu0 0
  %128 = vmatprep.subr.bf16.mxu0 0
  %129 = vmatpush1.bf16.msra.mxu0 0
  %130 = vmatprep.subr.bf16.mxu0 0
  %131 = vmatpush1.bf16.msra.mxu0 0
  %132 = vmatprep.mubr.bf16.mxu0 0
  %133 = vmatmul.mubr.bf16.gmra.mrb[0].mxu0 %v98
  %v134 = vpop.f32.mrb[0].mxu0
  %v135 = vadd.f32 %v89, %v134
  %v136 = vpop.f32.mrb[0].mxu0
  %v137 = vpop.f32.mrb[0].mxu0
  %v138 = vadd.f32 %v89, %v137
  %v139 = vpop.f32.mrb[0].mxu0
  %140 = vdwg.mxu0
  %v141 = vmax.f32 %v135, 0.0
  %v142 = vmax.f32 %v138, 0.0
  %v143 = vpack.c.bf16 %v142, %v141
  %v144 = vld [vmem:[%s4] sm:$0xf]
  %v145 = vld [vmem:[%s4 + $0x4] sm:$0xf]
  %v146 = vld [vmem:[%s4 + $0x8] sm:$0xf]
  %v147 = vld [vmem:[%s4 + $0xc] sm:$0xf]
  %v152 = vunpack.c.l.b16 %v144
  %v153 = vunpack.c.l.b16 %v145
  %v154 = vunpack.c.l.b16 %v146
  %v155 = vunpack.c.l.b16 %v147
  %v156 = vpack.c.b16 %v153, %v152
  %v157 = vpack.c.b16 %v155, %v154
  %vm160 = vcmask 261120
  %v162 = vsel %vm160, %v143, 0
  %164 = vmatprep.subr.bf16.mxu0 0
  %165 = vmatpush1.bf16.msra.mxu0 %v156
  %166 = vmatprep.subr.bf16.mxu0 0
  %167 = vmatpush1.bf16.msra.mxu0 %v157
  %168 = vmatprep.subr.bf16.mxu0 0
  %169 = vmatpush1.bf16.msra.mxu0 0
  %170 = vmatprep.subr.bf16.mxu0 0
  %171 = vmatpush1.bf16.msra.mxu0 0
  %172 = vmatprep.subr.bf16.mxu0 0
  %173 = vmatpush1.bf16.msra.mxu0 0
  %174 = vmatprep.subr.bf16.mxu0 0
  %175 = vmatpush1.bf16.msra.mxu0 0
  %176 = vmatprep.subr.bf16.mxu0 0
  %177 = vmatpush1.bf16.msra.mxu0 0
  %178 = vmatprep.subr.bf16.mxu0 0
  %179 = vmatpush1.bf16.msra.mxu0 0
  %180 = vmatprep.subr.bf16.mxu0 0
  %181 = vmatpush1.bf16.msra.mxu0 0
  %182 = vmatprep.subr.bf16.mxu0 0
  %183 = vmatpush1.bf16.msra.mxu0 0
  %184 = vmatprep.subr.bf16.mxu0 0
  %185 = vmatpush1.bf16.msra.mxu0 0
  %186 = vmatprep.subr.bf16.mxu0 0
  %187 = vmatpush1.bf16.msra.mxu0 0
  %188 = vmatprep.subr.bf16.mxu0 0
  %189 = vmatpush1.bf16.msra.mxu0 0
  %190 = vmatprep.subr.bf16.mxu0 0
  %191 = vmatpush1.bf16.msra.mxu0 0
  %192 = vmatprep.subr.bf16.mxu0 0
  %193 = vmatpush1.bf16.msra.mxu0 0
  %194 = vmatprep.subr.bf16.mxu0 0
  %195 = vmatpush1.bf16.msra.mxu0 0
  %196 = vmatprep.mubr.bf16.mxu0 0
  %197 = vmatmul.mubr.bf16.gmra.mrb[0].mxu0 %v162
  %v198 = vpop.f32.mrb[0].mxu0
  %v199 = vadd.f32 0.0, %v198
  %v200 = vpop.f32.mrb[0].mxu0
  %v201 = vpop.f32.mrb[0].mxu0
  %v202 = vadd.f32 0.0, %v201
  %v203 = vpop.f32.mrb[0].mxu0
  %204 = vdwg.mxu0
  %v205 = vpack.c.bf16 %v202, %v199
  %v206 = vld [vmem:[%s5] sm:$0x1]
  %v208 = vlaneseq
  %v209 = vshrl.u32 %v208, 7
  %v210 = vsub.s32 0, %v209
  %v211 = vrot.slane %v206, %v210
  %213 = vmatprep.subr.bf16.mxu0 0
  %214 = vmatpush1.bf16.msra.mxu0 %v205
  %215 = vmatprep.subr.bf16.mxu0 0
  %216 = vmatpush1.bf16.msra.mxu0 0
  %217 = vmatprep.subr.bf16.mxu0 0
  %218 = vmatpush1.bf16.msra.mxu0 0
  %219 = vmatprep.subr.bf16.mxu0 0
  %220 = vmatpush1.bf16.msra.mxu0 0
  %221 = vmatprep.subr.bf16.mxu0 0
  %222 = vmatpush1.bf16.msra.mxu0 0
  %223 = vmatprep.subr.bf16.mxu0 0
  %224 = vmatpush1.bf16.msra.mxu0 0
  %225 = vmatprep.subr.bf16.mxu0 0
  %226 = vmatpush1.bf16.msra.mxu0 0
  %227 = vmatprep.subr.bf16.mxu0 0
  %228 = vmatpush1.bf16.msra.mxu0 0
  %229 = vmatprep.subr.bf16.mxu0 0
  %230 = vmatpush1.bf16.msra.mxu0 0
  %231 = vmatprep.subr.bf16.mxu0 0
  %232 = vmatpush1.bf16.msra.mxu0 0
  %233 = vmatprep.subr.bf16.mxu0 0
  %234 = vmatpush1.bf16.msra.mxu0 0
  %235 = vmatprep.subr.bf16.mxu0 0
  %236 = vmatpush1.bf16.msra.mxu0 0
  %237 = vmatprep.subr.bf16.mxu0 0
  %238 = vmatpush1.bf16.msra.mxu0 0
  %239 = vmatprep.subr.bf16.mxu0 0
  %240 = vmatpush1.bf16.msra.mxu0 0
  %241 = vmatprep.subr.bf16.mxu0 0
  %242 = vmatpush1.bf16.msra.mxu0 0
  %243 = vmatprep.subr.bf16.mxu0 0
  %244 = vmatpush1.bf16.msra.mxu0 0
  %245 = vmatprep.mubr.bf16.mxu0 0
  %246 = vmatmul.mubr.bf16.gmra.mrb[0].mxu0 %v98
  %v247 = vpop.f32.mrb[0].mxu0
  %v248 = vadd.f32 %v211, %v247
  %v249 = vpop.f32.mrb[0].mxu0
  %v250 = vpop.f32.mrb[0].mxu0
  %v251 = vadd.f32 %v211, %v250
  %v252 = vpop.f32.mrb[0].mxu0
  %253 = vdwg.mxu0
  %v254 = vlaneseq
  %v255 = vand.u32 %v254, 127
  %vm256 = vcmp.lt.s32.totalorder %v255, 2
  %v257 = vsel %vm256, %v248, -inf
  %v258 = vsel %vm256, %v251, -inf
  %259 = vmax.xlane.f32.xlu0 %v257
  %v260 = vpop.xlane.xlu0 %259
  %261 = vmax.xlane.f32.xlu0 %v258
  %v262 = vpop.xlane.xlu0 %261
  %v263 = vsub.f32 %v257, %v260
  %v264 = vsub.f32 %v258, %v262
  %v265 = vmul.f32 %v263, 1.442695
  %v266 = vpow.pop %v265
  %v267 = vmul.f32 %v264, 1.442695
  %v268 = vpow.pop %v267
  %269 = vadd.xlane.f32.xlu0 %v266
  %v270 = vpop.xlane.xlu0 %269
  %271 = vadd.xlane.f32.xlu0 %v268
  %v272 = vpop.xlane.xlu0 %271
  %v273 = vrcp.pop %v270
  %v274 = vrcp.pop %v272
  %v275 = vmul.f32 %v266, %v273
  %v276 = vmul.f32 %v268, %v274
  %277 = vst [vmem:[%s6] sm:$0xff] %v275
  %278 = vst [vmem:[%s6 + $0x8] sm:$0xff] %v276
  // Predicated region
  $region26: #{gcn_forward.1} parent=0 // pred_check
    _
  $region27: #{gcn_forward.1} parent=0 // pred_check_branch
    %280 = sbr.rel (0) target = $region29
  $region28: #{gcn_forward.1} parent=0 // pred_region
    _
  $region29: #{gcn_forward.1} parent=0 // pred_fallthru
    _
  // Predicated region
  $region30: #{gcn_forward.1} parent=0 // pred_check
    _
  $region31: #{gcn_forward.1} parent=0 // pred_check_branch
    %282 = sbr.rel (0) target = $region33
  $region32: #{gcn_forward.1} parent=0 // pred_region
    _
  $region33: #{gcn_forward.1} parent=0 // pred_fallthru
    _

</llo_original>
